<compile_context>
chip_gen: v7x
topology: tpu7x:2x2x1
jax: 0.10.0
libtpu: 0.0.40
codegen_flags: <defaults>
</compile_context>

<pallas_src>
import jax
import jax.numpy as jnp
from jax.experimental import pallas as pl
from jax.experimental.pallas import tpu as pltpu


# ----------------------------------------------------------------------------
# Kernels
# ----------------------------------------------------------------------------
def _ip_reduce_kernel(xt_ref, idx_ref, out_ref):
    """reduce=True kernel (transposed layout -> lane-dense output).

    xt_ref : (D, N)  node embeddings, transposed (features on sublanes).
    idx_ref: (2, BE) int32, row 0 = src indices, row 1 = dst indices.
    out_ref: (1, BE) per-edge inner products (lane-dense row).
    """
    xt = xt_ref[...]                                   # (D, N)
    n = xt.shape[1]
    be = idx_ref.shape[1]

    # Fused one-hot for both endpoints: (N, 2*BE), column k selects node idx[k].
    idx_row = jnp.concatenate([idx_ref[0:1, :], idx_ref[1:2, :]], axis=1)  # (1, 2*BE)
    iota_n = jax.lax.broadcasted_iota(jnp.int32, (n, 2 * be), 0)           # (N, 2*BE)
    onehot_t = (iota_n == idx_row).astype(xt.dtype)                        # (N, 2*BE)

    # Single MXU matmul gathers both endpoints: g[d, k] = x[idx[k], d].
    g = jnp.dot(xt, onehot_t, preferred_element_type=jnp.float32)          # (D, 2*BE)

    prod = g[:, :be] * g[:, be:]                                           # (D, BE)
    out_ref[...] = jnp.sum(prod, axis=0, keepdims=True).astype(out_ref.dtype)


def _ip_noreduce_kernel(x_ref, idx_ref, out_ref):
    """reduce=False kernel (natural layout, D already lane-dense).

    x_ref  : (N, D)  node embeddings.
    idx_ref: (BE, 2) int32 edge endpoints (sublane-spread, matching the
             one-hot's row layout -> no in-kernel relayout of the indices).
    out_ref: (BE, D) elementwise products.
    """
    x = x_ref[...]                                      # (N, D)
    n = x.shape[0]
    be = idx_ref.shape[0]

    idx = idx_ref[...]                                  # (BE, 2)
    idx_col = jnp.concatenate([idx[:, 0:1], idx[:, 1:2]], axis=0)          # (2*BE, 1)
    iota_n = jax.lax.broadcasted_iota(jnp.int32, (2 * be, n), 1)           # (2*BE, N)
    onehot = (iota_n == idx_col).astype(x.dtype)                           # (2*BE, N)

    g = jnp.dot(onehot, x, preferred_element_type=jnp.float32)             # (2*BE, D)
    out_ref[...] = (g[:be, :] * g[be:, :]).astype(out_ref.dtype)


# ----------------------------------------------------------------------------
# Wrappers
# ----------------------------------------------------------------------------
def _round_up(v, m):
    return ((v + m - 1) // m) * m


def _vmem_limit_bytes(n, d, block, itemsize):
    # Double-buffered tiles (embedding table, index tile, output tile) plus the
    # in-kernel one-hot / gathered-row temporaries (f32).
    tiles = 2 * (n * d * itemsize
                 + 8 * block * 4
                 + max(8, block) * max(128, d) * itemsize)
    temps = 2 * (2 * block * n * 4) + 2 * (2 * block * d * 4)
    est = tiles + temps
    return int(min(64 * 2**20, max(32 * 2**20, 2 * est)))


def _inner_product_batched(x, edge_index, reduce=True, block_e=512):
    """x: (T, N, D) float, edge_index: (T, E, 2) int.

    Returns (T, E) if reduce else (T, E, D).
    """
    x = jnp.asarray(x)
    edge_index = jnp.asarray(edge_index)
    t, n, d = x.shape
    e = edge_index.shape[1]

    # Ragged E: pad edge list to a multiple of the tile (padded edges gather
    # node 0 and are sliced off below).
    block = min(block_e, _round_up(e, 128))
    e_pad = _round_up(e, block)
    n_eb = e_pad // block

    idx = edge_index.astype(jnp.int32)
    if e_pad != e:
        idx = jnp.concatenate(
            [idx, jnp.zeros((t, e_pad - e, 2), jnp.int32)], axis=1)

    itemsize = jnp.dtype(x.dtype).itemsize
    cp = pltpu.CompilerParams(
        dimension_semantics=("parallel", "parallel"),
        vmem_limit_bytes=_vmem_limit_bytes(n, d, block, itemsize),
    )

    if reduce:
        # Transposed layout: features on sublanes, edges on lanes -> the
        # per-edge sums come out as a lane-dense (1, block) row.
        xt = jnp.swapaxes(x, -1, -2)            # (T, D, N), one XLA transpose
        idx_t = jnp.swapaxes(idx, -1, -2)       # (T, 2, E_pad), lane-dense idx
        out = pl.pallas_call(
            _ip_reduce_kernel,
            out_shape=jax.ShapeDtypeStruct((t, 1, e_pad), x.dtype),
            grid_spec=pl.GridSpec(
                grid=(t, n_eb),
                in_specs=[
                    pl.BlockSpec((None, d, n), lambda ti, ebi: (ti, 0, 0)),
                    pl.BlockSpec((None, 2, block), lambda ti, ebi: (ti, 0, ebi)),
                ],
                out_specs=pl.BlockSpec((None, 1, block),
                                       lambda ti, ebi: (ti, 0, ebi)),
            ),
            compiler_params=cp,
        )(xt, idx_t)
        return out.reshape(t, e_pad)[:, :e]

    out = pl.pallas_call(
        _ip_noreduce_kernel,
        out_shape=jax.ShapeDtypeStruct((t, e_pad, d), x.dtype),
        grid_spec=pl.GridSpec(
            grid=(t, n_eb),
            in_specs=[
                pl.BlockSpec((None, n, d), lambda ti, ebi: (ti, 0, 0)),
                pl.BlockSpec((None, block, 2), lambda ti, ebi: (ti, ebi, 0)),
            ],
            out_specs=pl.BlockSpec((None, block, d),
                                   lambda ti, ebi: (ti, ebi, 0)),
        ),
        compiler_params=cp,
    )(x, idx)
    return out[:, :e, :]


def _inner_product_single(x, edge_index, reduce=True, block_e=512):
    out = _inner_product_batched(x[None], edge_index[None], reduce, block_e)
    return out[0]


def inner_product(x, edge_index, reduce=True, block_e=512):
    """Mirrors InnerProduct.forward (list / 3-D timestamped inputs -> list)."""
    if isinstance(x, (list, tuple)):
        xs = [jnp.asarray(xi) for xi in x]
        es = [jnp.asarray(ei) for ei in edge_index]
        same = (len({xi.shape for xi in xs}) == 1
                and len({ei.shape for ei in es}) == 1)
        if same:
            outs = _inner_product_batched(jnp.stack(xs), jnp.stack(es),
                                          reduce, block_e)
            return [outs[i] for i in range(outs.shape[0])]
        return [_inner_product_single(xs[i], es[i], reduce, block_e)
                for i in range(len(xs))]

    x = jnp.asarray(x)
    edge_index = jnp.asarray(edge_index)
    if x.ndim == 3:
        outs = _inner_product_batched(x, edge_index, reduce, block_e)
        return [outs[i] for i in range(outs.shape[0])]
    return _inner_product_single(x, edge_index, reduce, block_e)


# ----------------------------------------------------------------------------
# Reference + demo
# ----------------------------------------------------------------------------
def _reference(x, edge_index, reduce=True):
    ei = x[edge_index[:, 0]]
    ej = x[edge_index[:, 1]]
    return jnp.sum(ei * ej, axis=1) if reduce else ei * ej


if __name__ == "__main__":
    key = jax.random.PRNGKey(0)
    kx, ke, kx3, ke3 = jax.random.split(key, 4)

    # Small shapes; E deliberately not a multiple of the tile to exercise padding.
    N, D, E, T = 64, 128, 1000, 2

    # ---- 2-D single-graph case -------------------------------------------
    x = jax.random.normal(kx, (N, D), dtype=jnp.float32)
    edge_index = jax.random.randint(ke, (E, 2), 0, N, dtype=jnp.int32)

    out_red = inner_product(x, edge_index, reduce=True)
    out_full = inner_product(x, edge_index, reduce=False)
    jax.block_until_ready(out_red)
    jax.block_until_ready(out_full)

    ref_red = _reference(x, edge_index, reduce=True)
    ref_full = _reference(x, edge_index, reduce=False)
    assert out_red.shape == (E,) and out_full.shape == (E, D)
    assert jnp.allclose(out_red, ref_red, atol=1e-3, rtol=1e-4)
    assert jnp.allclose(out_full, ref_full, atol=1e-3, rtol=1e-4)

    # ---- 3-D (timestamped) case ------------------------------------------
    x3 = jax.random.normal(kx3, (T, N, D), dtype=jnp.float32)
    edge3 = jax.random.randint(ke3, (T, E, 2), 0, N, dtype=jnp.int32)

    outs_r = inner_product(x3, edge3, reduce=True)
    outs_f = inner_product(x3, edge3, reduce=False)
    jax.block_until_ready(outs_r[-1])
    jax.block_until_ready(outs_f[-1])
    for t_ in range(T):
        assert outs_r[t_].shape == (E,)
        assert outs_f[t_].shape == (E, D)
        assert jnp.allclose(outs_r[t_], _reference(x3[t_], edge3[t_], True),
                            atol=1e-3, rtol=1e-4)
        assert jnp.allclose(outs_f[t_], _reference(x3[t_], edge3[t_], False),
                            atol=1e-3, rtol=1e-4)

    print("KERNEL_OK")
</pallas_src>

<mosaic_0001>
module attributes {stable_mosaic.version = 11 : i64} {
  func.func @_ip_reduce_kernel(%arg0: i32, %arg1: i32, %arg2: memref<1x128x64xf32, #tpu.memory_space<vmem>>, %arg3: memref<1x2x512xi32, #tpu.memory_space<vmem>>, %arg4: memref<1x1x512xf32, #tpu.memory_space<vmem>>) attributes {dimension_semantics = [#tpu.dimension_semantics<parallel>, #tpu.dimension_semantics<parallel>], iteration_bounds = array<i64: 1, 2>, scalar_prefetch = 0 : i64, scratch_operands = 0 : i64, tpu.core_type = #tpu.core_type<tc>, window_params = [{transform_indices = @transform_0, window_bounds = array<i64: 1, 128, 64>}, {transform_indices = @transform_1, window_bounds = array<i64: 1, 2, 512>}, {transform_indices = @transform_2, window_bounds = array<i64: 1, 1, 512>}]} {
    %c0 = arith.constant 0 : index
    %c0_0 = arith.constant 0 : index
    %c0_1 = arith.constant 0 : index
    %0 = vector.load %arg2[%c0, %c0_0, %c0_1] : memref<1x128x64xf32, #tpu.memory_space<vmem>>, vector<1x128x64xf32>
    %1 = vector.shape_cast %0 : vector<1x128x64xf32> to vector<128x64xf32>
    %c0_2 = arith.constant 0 : index
    %c0_3 = arith.constant 0 : index
    %c0_4 = arith.constant 0 : index
    %2 = vector.load %arg3[%c0_2, %c0_3, %c0_4] : memref<1x2x512xi32, #tpu.memory_space<vmem>>, vector<1x1x512xi32>
    %3 = vector.shape_cast %2 : vector<1x1x512xi32> to vector<1x512xi32>
    %c0_5 = arith.constant 0 : index
    %c1 = arith.constant 1 : index
    %c0_6 = arith.constant 0 : index
    %4 = vector.load %arg3[%c0_5, %c1, %c0_6] : memref<1x2x512xi32, #tpu.memory_space<vmem>>, vector<1x1x512xi32>
    %5 = vector.shape_cast %4 : vector<1x1x512xi32> to vector<1x512xi32>
    %6 = tpu.concatenate %3, %5 in 1 : vector<1x512xi32>, vector<1x512xi32> -> vector<1x1024xi32>
    %7 = tpu.iota {dimensions = array<i32: 0>} : vector<64x1024xi32>
    %8 = vector.broadcast %6 : vector<1x1024xi32> to vector<64x1024xi32>
    %9 = arith.cmpi eq, %7, %8 : vector<64x1024xi32>
    %10 = arith.extui %9 : vector<64x1024xi1> to vector<64x1024xi32>
    %11 = arith.sitofp %10 : vector<64x1024xi32> to vector<64x1024xf32>
    %cst = arith.constant dense<0.000000e+00> : vector<128x1024xf32>
    %12 = tpu.matmul %1, %11, %cst {dimension_numbers = #tpu.dot_dimension_numbers<[1], [0], [0], [1], [0, 0, 1, 1], [], []>} : vector<128x64xf32>, vector<64x1024xf32>, vector<128x1024xf32> -> vector<128x1024xf32>
    %13 = vector.extract_strided_slice %12 {offsets = [0, 0], sizes = [128, 512], strides = [1, 1]} : vector<128x1024xf32> to vector<128x512xf32>
    %14 = vector.extract_strided_slice %12 {offsets = [0, 512], sizes = [128, 512], strides = [1, 1]} : vector<128x1024xf32> to vector<128x512xf32>
    %15 = arith.mulf %13, %14 : vector<128x512xf32>
    %cst_7 = arith.constant dense<0.000000e+00> : vector<512xf32>
    %16 = vector.multi_reduction <add>, %15, %cst_7 [0] : vector<128x512xf32> to vector<512xf32>
    %17 = vector.shape_cast %16 : vector<512xf32> to vector<1x512xf32>
    %c0_8 = arith.constant 0 : index
    %c0_9 = arith.constant 0 : index
    %c0_10 = arith.constant 0 : index
    %18 = vector.load %arg4[%c0_8, %c0_9, %c0_10] : memref<1x1x512xf32, #tpu.memory_space<vmem>>, vector<1x1x512xf32>
    %19 = vector.shape_cast %18 : vector<1x1x512xf32> to vector<1x512xf32>
    %20 = vector.shape_cast %17 : vector<1x512xf32> to vector<1x1x512xf32>
    tpu.vector_store %arg4[%c0_8, %c0_9, %c0_10], %20 {strides = array<i32>} : memref<1x1x512xf32, #tpu.memory_space<vmem>>, vector<1x1x512xf32>,
    return
  }
  func.func @transform_0(%arg0: i32, %arg1: i32) -> (i32, i32, i32) {
    %c0_i32 = arith.constant 0 : i32
    %c0_i32_0 = arith.constant 0 : i32
    %c0_i32_1 = arith.constant 0 : i32
    return %arg0, %c0_i32, %c0_i32_0 : i32, i32, i32
  }
  func.func @transform_1(%arg0: i32, %arg1: i32) -> (i32, i32, i32) {
    %c0_i32 = arith.constant 0 : i32
    %c0_i32_0 = arith.constant 0 : i32
    return %arg0, %c0_i32, %arg1 : i32, i32, i32
  }
  func.func @transform_2(%arg0: i32, %arg1: i32) -> (i32, i32, i32) {
    %c0_i32 = arith.constant 0 : i32
    %c0_i32_0 = arith.constant 0 : i32
    return %arg0, %c0_i32, %arg1 : i32, i32, i32
  }
}

</mosaic_0001>

<llo_original>
// kernel: tpu_custom_call.1
$region0: #{tpu_custom_call.1}
  #allocation0 [shape = 'u32[]', space=smem, size = 0x4, offset = 0x4, fixed_abs, tag = 'smem constant byte address 0x4 - core index']
  #allocation1 [shape = 'u32[144,128]{1,0:T(1,128)}', space=vmem, size = 0x12000, scoped, tag = 'internal scratch']
  %s0 = inlined_call_operand.vmem [shape: f32[1,128,64], index: 0, kind: input, shape index: {}]
  %s1 = inlined_call_operand.vmem [shape: s32[1,2,1024], index: 1, kind: input, shape index: {}]
  %s2 = inlined_call_operand.hbm [shape: f32[1,1,1024], index: 2, kind: output, shape index: {}]
  %s3 = sld [smem:[#allocation0]]
  $region41: #{tpu_custom_call.1} parent=0
    _
  %s5 = ssub.s32 1, %s3
  %s6 = scalar_select 0, %s5, %s3
  $region1: #{tpu_custom_call.1} parent=0
    #allocation2 [shape = 'u8[4096]{0}', space=vmem, size = 0x1000, scoped, tag = 'output window, operand 0']
    #allocation3 [shape = 's32[2]{0}', space=sflag, size = 0x8, scoped, tag = 'scoped memory for tpu_custom_call.1']
    %7 = vsyncpa [#allocation3], 0
    %s8 = scalar_lea.sflag [#allocation3], 1
    %9 = vsyncpa %s8, 0
    loop: start=0, step=1, limit=4
    $region2: #{tpu_custom_call.1} parent=1 // loop_pre_header
      _
    $region3: #{tpu_custom_call.1} parent=1 // loop_header
      %s11 = sphi 0, %s15
      %p12 = scmp.ge.s32.totalorder %s11, 4
      %s18 = sphi 0, %s30
      %s19 = sphi 0, %s26
      %s20 = sphi 0, %s18
      %s21 = sphi 0, %s19
      %s22 = sphi 0, %s20
      %s23 = sphi 0, %s21
      %s33 = sphi 0, %s35
      %s36 = sphi 0, %s33
      %s37 = sphi 0, %s36
      %s53 = sphi 0, %s37
      %s61 = sphi 0, %s63
      %s64 = sphi 0, %s61
      %s65 = sphi 0, %s64
      %s81 = sphi 0, %s65
      %s89 = sphi 0, %s91
      %s92 = sphi 0, %s89
      %s93 = sphi 0, %s92
      %s109 = sphi 0, %s93
    $region4: #{tpu_custom_call.1} parent=1 // loop_header_branch
      %14 = sbr.rel (%p12) target = $region8
    $region5: #{tpu_custom_call.1} parent=1 // loop_body
      %s16 = ssub.s32 %s11, 1
      %s17 = ssub.s32 %s11, 2
      %s24 = sadd.s32 1, %s19
      %p25 = scmp.ge.s32.totalorder %s24, 2
      %s26 = scalar_select %p25, 0, %s24
      %s27 = sadd.s32 1, %s18
      %s28 = scalar_select %p25, %s27, %s18
      %p29 = scmp.ge.s32.totalorder %s28, 1
      %s30 = scalar_select %p29, 0, %s28
      %s31 = ssub.s32 %s18, %s30
      %p32 = scmp.eq.s32.totalorder %s31, 0
      %s34 = sadd.s32 %s33, 1
      %s35 = scalar_select %p32, %s33, %s34
      %p38 = pneg %p32
      %p39 = scmp.eq.s32.totalorder %s11, 1
      %p40 = por %p38, %p39
      %p41 = scmp.ne.s32.totalorder %s33, %s36
      %p42 = scmp.eq.s32.totalorder %s11, 0
      %p43 = por %p41, %p42
      %p44 = scmp.ne.s32.totalorder %s33, %s36
      %p45 = scmp.eq.s32.totalorder %s16, 1
      %p46 = por %p44, %p45
      %p47 = scmp.ne.s32.totalorder %s36, %s37
      %p48 = scmp.eq.s32.totalorder %s16, 0
      %p49 = por %p47, %p48
      %p50 = scmp.ne.s32.totalorder %s36, %s37
      %p51 = scmp.eq.s32.totalorder %s17, 1
      %p52 = por %p50, %p51
      %p54 = scmp.ne.s32.totalorder %s37, %s53
      %p55 = scmp.eq.s32.totalorder %s17, 0
      %p56 = por %p54, %p55
      %s57 = ssub.s32 %s18, %s30
      %s58 = ssub.s32 %s19, %s26
      %s59 = sor.u32 %s57, %s58
      %p60 = scmp.eq.s32.totalorder %s59, 0
      %s62 = sadd.s32 %s61, 1
      %s63 = scalar_select %p60, %s61, %s62
      %p66 = pneg %p60
      %p67 = scmp.eq.s32.totalorder %s11, 1
      %p68 = por %p66, %p67
      %p69 = scmp.ne.s32.totalorder %s61, %s64
      %p70 = scmp.eq.s32.totalorder %s11, 0
      %p71 = por %p69, %p70
      %p72 = scmp.ne.s32.totalorder %s61, %s64
      %p73 = scmp.eq.s32.totalorder %s16, 1
      %p74 = por %p72, %p73
      %p75 = scmp.ne.s32.totalorder %s64, %s65
      %p76 = scmp.eq.s32.totalorder %s16, 0
      %p77 = por %p75, %p76
      %p78 = scmp.ne.s32.totalorder %s64, %s65
      %p79 = scmp.eq.s32.totalorder %s17, 1
      %p80 = por %p78, %p79
      %p82 = scmp.ne.s32.totalorder %s65, %s81
      %p83 = scmp.eq.s32.totalorder %s17, 0
      %p84 = por %p82, %p83
      %s85 = ssub.s32 %s18, %s30
      %s86 = ssub.s32 %s19, %s26
      %s87 = sor.u32 %s85, %s86
      %p88 = scmp.eq.s32.totalorder %s87, 0
      %s90 = sadd.s32 %s89, 1
      %s91 = scalar_select %p88, %s89, %s90
      %p94 = pneg %p88
      %p95 = scmp.eq.s32.totalorder %s11, 1
      %p96 = por %p94, %p95
      %p97 = scmp.ne.s32.totalorder %s89, %s92
      %p98 = scmp.eq.s32.totalorder %s11, 0
      %p99 = por %p97, %p98
      %p100 = scmp.ne.s32.totalorder %s89, %s92
      %p101 = scmp.eq.s32.totalorder %s16, 1
      %p102 = por %p100, %p101
      %p103 = scmp.ne.s32.totalorder %s92, %s93
      %p104 = scmp.eq.s32.totalorder %s16, 0
      %p105 = por %p103, %p104
      %p106 = scmp.ne.s32.totalorder %s92, %s93
      %p107 = scmp.eq.s32.totalorder %s17, 1
      %p108 = por %p106, %p107
      %p110 = scmp.ne.s32.totalorder %s93, %s109
      %p111 = scmp.eq.s32.totalorder %s17, 0
      %p112 = por %p110, %p111
      %p113 = scmp.le.s32.totalorder 1, %s11
      %p114 = scmp.lt.s32.totalorder %s11, 3
      %p115 = pnand %p113, %p114
      %p116 = pneg %p115
      // Predicated region
      $region9: #{tpu_custom_call.1} parent=5 // pred_check
        _
      $region10: #{tpu_custom_call.1} parent=5 // pred_check_branch
        %118 = sbr.rel (%p115) target = $region12
      $region11: #{tpu_custom_call.1} parent=5 // pred_region
        %s119 = ssub.s32 %s11, 1
        // Predicated region
        $region13: #{tpu_custom_call.1} parent=11 // pred_check
          %p120 = pneg %p49
        $region14: #{tpu_custom_call.1} parent=11 // pred_check_branch
          %122 = sbr.rel (%p120) target = $region16
        $region15: #{tpu_custom_call.1} parent=11 // pred_region
          %p123 = scmp.lt.s32.totalorder %s20, 0
          %s124 = scalar_select %p123, %s20, 0
          %s125 = smul.addr %s124, 16
          %s126 = smul.addr %s125, 8
          %s127 = scalar_lea.vmem %s0, %s126
        $region16: #{tpu_custom_call.1} parent=11 // pred_fallthru
          _
      $region12: #{tpu_custom_call.1} parent=5 // pred_fallthru
        _
      %p128 = scmp.lt.s32.totalorder %s11, 2
      // Predicated region
      $region17: #{tpu_custom_call.1} parent=5 // pred_check
        %p129 = pneg %p128
      $region18: #{tpu_custom_call.1} parent=5 // pred_check_branch
        %131 = sbr.rel (%p129) target = $region20
      $region19: #{tpu_custom_call.1} parent=5 // pred_region
        // Predicated region
        $region21: #{tpu_custom_call.1} parent=19 // pred_check
          %p132 = pneg %p71
        $region22: #{tpu_custom_call.1} parent=19 // pred_check_branch
          %134 = sbr.rel (%p132) target = $region24
        $region23: #{tpu_custom_call.1} parent=19 // pred_region
          %s135 = smul.u32 4, %s19
          %p136 = scmp.lt.s32.totalorder %s18, 0
          %s137 = scalar_select %p136, %s18, 0
          %p138 = scmp.lt.s32.totalorder %s135, 7
          %s139 = scalar_select %p138, %s135, 7
          %s140 = smul.addr %s137, 8
          %s141 = sadd.s32 %s139, %s140
          %s142 = smul.addr %s141, 2
          %s143 = scalar_lea.vmem %s1, %s142
          %s144 = smul.u32 4, %s19
        $region24: #{tpu_custom_call.1} parent=19 // pred_fallthru
          _
      $region20: #{tpu_custom_call.1} parent=5 // pred_fallthru
        _
      %p145 = scmp.le.s32.totalorder 1, %s11
      %p146 = scmp.lt.s32.totalorder %s11, 3
      %p147 = pnand %p145, %p146
      %p148 = pneg %p147
      // Predicated region
      $region25: #{tpu_custom_call.1} parent=5 // pred_check
        _
      $region26: #{tpu_custom_call.1} parent=5 // pred_check_branch
        %150 = sbr.rel (%p147) target = $region28
      $region27: #{tpu_custom_call.1} parent=5 // pred_region
        %s151 = ssub.s32 %s11, 1
        %p152 = scmp.lt.s32.totalorder %s20, 0
        %s153 = scalar_select %p152, %s20, 0
        %s154 = smul.addr %s153, 16
        %s155 = smul.addr %s154, 8
        %s156 = scalar_lea.vmem %s0, %s155
        %p157 = pneg %p49
        %p158 = pneg %p46
        %s159 = smul.u32 4, %s21
        %p160 = scmp.lt.s32.totalorder %s20, 0
        %s161 = scalar_select %p160, %s20, 0
        %p162 = scmp.lt.s32.totalorder %s159, 7
        %s163 = scalar_select %p162, %s159, 7
        %s164 = smul.addr %s161, 8
        %s165 = sadd.s32 %s163, %s164
        %s166 = smul.addr %s165, 2
        %s167 = scalar_lea.vmem %s1, %s166
        %p168 = pneg %p77
        %p169 = pneg %p74
        %p170 = pneg %p105
        %p171 = pneg %p102
        %s172 = sand.u32 %s92, 1
        %s173 = scalar_lea.sflag [#allocation3], %s172
        %s174 = sand.u32 %s92, 1
        %s175 = smul.addr %s174, 4
        %s176 = scalar_lea.vmem [#allocation2], %s175
        %p177 = scmp.lt.s32.totalorder %s20, 0
        %s178 = scalar_select %p177, %s20, 0
        %s179 = smul.addr %s178, 16
        %s180 = smul.addr %s179, 8
        %s181 = scalar_lea.vmem %s0, %s180
        %s182 = smul.u32 4, %s21
        %p183 = scmp.lt.s32.totalorder %s20, 0
        %s184 = scalar_select %p183, %s20, 0
        %p185 = scmp.lt.s32.totalorder %s182, 7
        %s186 = scalar_select %p185, %s182, 7
        %s187 = smul.addr %s184, 8
        %s188 = sadd.s32 %s186, %s187
        %s189 = smul.addr %s188, 2
        %s190 = scalar_lea.vmem %s1, %s189
        %s191 = smul.u32 4, %s21
        %s192 = smul.u32 4, %s21
        %v193 = vld [vmem:[%s181] sm:$0xff]
        %v194 = vld [vmem:[%s181 + $0x8] sm:$0xff]
        %v195 = vld [vmem:[%s181 + $0x10] sm:$0xff]
        %v196 = vld [vmem:[%s181 + $0x18] sm:$0xff]
        %v197 = vld [vmem:[%s181 + $0x20] sm:$0xff]
        %v198 = vld [vmem:[%s181 + $0x28] sm:$0xff]
        %v199 = vld [vmem:[%s181 + $0x30] sm:$0xff]
        %v200 = vld [vmem:[%s181 + $0x38] sm:$0xff]
        %v201 = vld [vmem:[%s181 + $0x40] sm:$0xff]
        %v202 = vld [vmem:[%s181 + $0x48] sm:$0xff]
        %v203 = vld [vmem:[%s181 + $0x50] sm:$0xff]
        %v204 = vld [vmem:[%s181 + $0x58] sm:$0xff]
        %v205 = vld [vmem:[%s181 + $0x60] sm:$0xff]
        %v206 = vld [vmem:[%s181 + $0x68] sm:$0xff]
        %v207 = vld [vmem:[%s181 + $0x70] sm:$0xff]
        %v208 = vld [vmem:[%s181 + $0x78] sm:$0xff]
        %v209 = vld [vmem:[%s190] ss:$2 sm:$0xf]
        %s210 = scalar_lea.vmem %s190, 1
        %v211 = vld [vmem:[%s210] ss:$2 sm:$0xf]
        %v212 = vlaneseq
        %v213 = vshrl.u32 %v212, 7
        %v214 = vsub.s32 0, %v213
        %v215 = vrot.slane %v209, %v214
        %v216 = vlaneseq
        %v217 = vshrl.u32 %v216, 7
        %v218 = vsub.s32 1, %v217
        %v219 = vrot.slane %v209, %v218
        %v220 = vlaneseq
        %v221 = vshrl.u32 %v220, 7
        %v222 = vsub.s32 2, %v221
        %v223 = vrot.slane %v209, %v222
        %v224 = vlaneseq
        %v225 = vshrl.u32 %v224, 7
        %v226 = vsub.s32 3, %v225
        %v227 = vrot.slane %v209, %v226
        %v228 = vlaneseq
        %v229 = vshrl.u32 %v228, 7
        %v230 = vsub.s32 0, %v229
        %v231 = vrot.slane %v211, %v230
        %v232 = vlaneseq
        %v233 = vshrl.u32 %v232, 7
        %v234 = vsub.s32 1, %v233
        %v235 = vrot.slane %v211, %v234
        %v236 = vlaneseq
        %v237 = vshrl.u32 %v236, 7
        %v238 = vsub.s32 2, %v237
        %v239 = vrot.slane %v211, %v238
        %v240 = vlaneseq
        %v241 = vshrl.u32 %v240, 7
        %v242 = vsub.s32 3, %v241
        %v243 = vrot.slane %v211, %v242
        %v244 = vlaneseq
        %v245 = vshrl.u32 %v244, 7
        %v246 = vadd.s32 %v245, 8
        %v247 = vadd.s32 %v245, 16
        %v248 = vadd.s32 %v245, 24
        %v249 = vadd.s32 %v245, 32
        %v250 = vadd.s32 %v245, 40
        %v251 = vadd.s32 %v245, 48
        %v252 = vadd.s32 %v245, 56
        %v253 = vlaneseq
        %v254 = vshrl.u32 %v253, 7
        %v255 = vsub.s32 0, %v254
        %v256 = vrot.slane %v215, %v255
        %v257 = vlaneseq
        %v258 = vshrl.u32 %v257, 7
        %v259 = vsub.s32 0, %v258
        %v260 = vrot.slane %v219, %v259
        %v261 = vlaneseq
        %v262 = vshrl.u32 %v261, 7
        %v263 = vsub.s32 0, %v262
        %v264 = vrot.slane %v223, %v263
        %v265 = vlaneseq
        %v266 = vshrl.u32 %v265, 7
        %v267 = vsub.s32 0, %v266
        %v268 = vrot.slane %v227, %v267
        %v269 = vlaneseq
        %v270 = vshrl.u32 %v269, 7
        %v271 = vsub.s32 0, %v270
        %v272 = vrot.slane %v231, %v271
        %v273 = vlaneseq
        %v274 = vshrl.u32 %v273, 7
        %v275 = vsub.s32 0, %v274
        %v276 = vrot.slane %v235, %v275
        %v277 = vlaneseq
        %v278 = vshrl.u32 %v277, 7
        %v279 = vsub.s32 0, %v278
        %v280 = vrot.slane %v239, %v279
        %v281 = vlaneseq
        %v282 = vshrl.u32 %v281, 7
        %v283 = vsub.s32 0, %v282
        %v284 = vrot.slane %v243, %v283
        %vm285 = vcmp.eq.s32.totalorder %v245, %v256
        %vm286 = vcmp.eq.s32.totalorder %v245, %v260
        %vm287 = vcmp.eq.s32.totalorder %v245, %v264
        %vm288 = vcmp.eq.s32.totalorder %v245, %v268
        %vm289 = vcmp.eq.s32.totalorder %v245, %v272
        %vm290 = vcmp.eq.s32.totalorder %v245, %v276
        %vm291 = vcmp.eq.s32.totalorder %v245, %v280
        %vm292 = vcmp.eq.s32.totalorder %v245, %v284
        %vm293 = vcmp.eq.s32.totalorder %v246, %v256
        %vm294 = vcmp.eq.s32.totalorder %v246, %v260
        %vm295 = vcmp.eq.s32.totalorder %v246, %v264
        %vm296 = vcmp.eq.s32.totalorder %v246, %v268
        %vm297 = vcmp.eq.s32.totalorder %v246, %v272
        %vm298 = vcmp.eq.s32.totalorder %v246, %v276
        %vm299 = vcmp.eq.s32.totalorder %v246, %v280
        %vm300 = vcmp.eq.s32.totalorder %v246, %v284
        %vm301 = vcmp.eq.s32.totalorder %v247, %v256
        %vm302 = vcmp.eq.s32.totalorder %v247, %v260
        %vm303 = vcmp.eq.s32.totalorder %v247, %v264
        %vm304 = vcmp.eq.s32.totalorder %v247, %v268
        %vm305 = vcmp.eq.s32.totalorder %v247, %v272
        %vm306 = vcmp.eq.s32.totalorder %v247, %v276
        %vm307 = vcmp.eq.s32.totalorder %v247, %v280
        %vm308 = vcmp.eq.s32.totalorder %v247, %v284
        %vm309 = vcmp.eq.s32.totalorder %v248, %v256
        %vm310 = vcmp.eq.s32.totalorder %v248, %v260
        %vm311 = vcmp.eq.s32.totalorder %v248, %v264
        %vm312 = vcmp.eq.s32.totalorder %v248, %v268
        %vm313 = vcmp.eq.s32.totalorder %v248, %v272
        %vm314 = vcmp.eq.s32.totalorder %v248, %v276
        %vm315 = vcmp.eq.s32.totalorder %v248, %v280
        %vm316 = vcmp.eq.s32.totalorder %v248, %v284
        %vm317 = vcmp.eq.s32.totalorder %v249, %v256
        %vm318 = vcmp.eq.s32.totalorder %v249, %v260
        %vm319 = vcmp.eq.s32.totalorder %v249, %v264
        %vm320 = vcmp.eq.s32.totalorder %v249, %v268
        %vm321 = vcmp.eq.s32.totalorder %v249, %v272
        %vm322 = vcmp.eq.s32.totalorder %v249, %v276
        %vm323 = vcmp.eq.s32.totalorder %v249, %v280
        %vm324 = vcmp.eq.s32.totalorder %v249, %v284
        %vm325 = vcmp.eq.s32.totalorder %v250, %v256
        %vm326 = vcmp.eq.s32.totalorder %v250, %v260
        %vm327 = vcmp.eq.s32.totalorder %v250, %v264
        %vm328 = vcmp.eq.s32.totalorder %v250, %v268
        %vm329 = vcmp.eq.s32.totalorder %v250, %v272
        %vm330 = vcmp.eq.s32.totalorder %v250, %v276
        %vm331 = vcmp.eq.s32.totalorder %v250, %v280
        %vm332 = vcmp.eq.s32.totalorder %v250, %v284
        %vm333 = vcmp.eq.s32.totalorder %v251, %v256
        %vm334 = vcmp.eq.s32.totalorder %v251, %v260
        %vm335 = vcmp.eq.s32.totalorder %v251, %v264
        %vm336 = vcmp.eq.s32.totalorder %v251, %v268
        %vm337 = vcmp.eq.s32.totalorder %v251, %v272
        %vm338 = vcmp.eq.s32.totalorder %v251, %v276
        %vm339 = vcmp.eq.s32.totalorder %v251, %v280
        %vm340 = vcmp.eq.s32.totalorder %v251, %v284
        %vm341 = vcmp.eq.s32.totalorder %v252, %v256
        %vm342 = vcmp.eq.s32.totalorder %v252, %v260
        %vm343 = vcmp.eq.s32.totalorder %v252, %v264
        %vm344 = vcmp.eq.s32.totalorder %v252, %v268
        %vm345 = vcmp.eq.s32.totalorder %v252, %v272
        %vm346 = vcmp.eq.s32.totalorder %v252, %v276
        %vm347 = vcmp.eq.s32.totalorder %v252, %v280
        %vm348 = vcmp.eq.s32.totalorder %v252, %v284
        %v349 = vsel %vm285, 1, 0
        %v350 = vsel %vm286, 1, 0
        %v351 = vsel %vm287, 1, 0
        %v352 = vsel %vm288, 1, 0
        %v353 = vsel %vm289, 1, 0
        %v354 = vsel %vm290, 1, 0
        %v355 = vsel %vm291, 1, 0
        %v356 = vsel %vm292, 1, 0
        %v357 = vsel %vm293, 1, 0
        %v358 = vsel %vm294, 1, 0
        %v359 = vsel %vm295, 1, 0
        %v360 = vsel %vm296, 1, 0
        %v361 = vsel %vm297, 1, 0
        %v362 = vsel %vm298, 1, 0
        %v363 = vsel %vm299, 1, 0
        %v364 = vsel %vm300, 1, 0
        %v365 = vsel %vm301, 1, 0
        %v366 = vsel %vm302, 1, 0
        %v367 = vsel %vm303, 1, 0
        %v368 = vsel %vm304, 1, 0
        %v369 = vsel %vm305, 1, 0
        %v370 = vsel %vm306, 1, 0
        %v371 = vsel %vm307, 1, 0
        %v372 = vsel %vm308, 1, 0
        %v373 = vsel %vm309, 1, 0
        %v374 = vsel %vm310, 1, 0
        %v375 = vsel %vm311, 1, 0
        %v376 = vsel %vm312, 1, 0
        %v377 = vsel %vm313, 1, 0
        %v378 = vsel %vm314, 1, 0
        %v379 = vsel %vm315, 1, 0
        %v380 = vsel %vm316, 1, 0
        %v381 = vsel %vm317, 1, 0
        %v382 = vsel %vm318, 1, 0
        %v383 = vsel %vm319, 1, 0
        %v384 = vsel %vm320, 1, 0
        %v385 = vsel %vm321, 1, 0
        %v386 = vsel %vm322, 1, 0
        %v387 = vsel %vm323, 1, 0
        %v388 = vsel %vm324, 1, 0
        %v389 = vsel %vm325, 1, 0
        %v390 = vsel %vm326, 1, 0
        %v391 = vsel %vm327, 1, 0
        %v392 = vsel %vm328, 1, 0
        %v393 = vsel %vm329, 1, 0
        %v394 = vsel %vm330, 1, 0
        %v395 = vsel %vm331, 1, 0
        %v396 = vsel %vm332, 1, 0
        %v397 = vsel %vm333, 1, 0
        %v398 = vsel %vm334, 1, 0
        %v399 = vsel %vm335, 1, 0
        %v400 = vsel %vm336, 1, 0
        %v401 = vsel %vm337, 1, 0
        %v402 = vsel %vm338, 1, 0
        %v403 = vsel %vm339, 1, 0
        %v404 = vsel %vm340, 1, 0
        %v405 = vsel %vm341, 1, 0
        %v406 = vsel %vm342, 1, 0
        %v407 = vsel %vm343, 1, 0
        %v408 = vsel %vm344, 1, 0
        %v409 = vsel %vm345, 1, 0
        %v410 = vsel %vm346, 1, 0
        %v411 = vsel %vm347, 1, 0
        %v412 = vsel %vm348, 1, 0
        %v413 = vcvt.s32.f32 %v349
        %v414 = vcvt.s32.f32 %v350
        %v415 = vcvt.s32.f32 %v351
        %v416 = vcvt.s32.f32 %v352
        %v417 = vcvt.s32.f32 %v353
        %v418 = vcvt.s32.f32 %v354
        %v419 = vcvt.s32.f32 %v355
        %v420 = vcvt.s32.f32 %v356
        %v421 = vcvt.s32.f32 %v357
        %v422 = vcvt.s32.f32 %v358
        %v423 = vcvt.s32.f32 %v359
        %v424 = vcvt.s32.f32 %v360
        %v425 = vcvt.s32.f32 %v361
        %v426 = vcvt.s32.f32 %v362
        %v427 = vcvt.s32.f32 %v363
        %v428 = vcvt.s32.f32 %v364
        %v429 = vcvt.s32.f32 %v365
        %v430 = vcvt.s32.f32 %v366
        %v431 = vcvt.s32.f32 %v367
        %v432 = vcvt.s32.f32 %v368
        %v433 = vcvt.s32.f32 %v369
        %v434 = vcvt.s32.f32 %v370
        %v435 = vcvt.s32.f32 %v371
        %v436 = vcvt.s32.f32 %v372
        %v437 = vcvt.s32.f32 %v373
        %v438 = vcvt.s32.f32 %v374
        %v439 = vcvt.s32.f32 %v375
        %v440 = vcvt.s32.f32 %v376
        %v441 = vcvt.s32.f32 %v377
        %v442 = vcvt.s32.f32 %v378
        %v443 = vcvt.s32.f32 %v379
        %v444 = vcvt.s32.f32 %v380
        %v445 = vcvt.s32.f32 %v381
        %v446 = vcvt.s32.f32 %v382
        %v447 = vcvt.s32.f32 %v383
        %v448 = vcvt.s32.f32 %v384
        %v449 = vcvt.s32.f32 %v385
        %v450 = vcvt.s32.f32 %v386
        %v451 = vcvt.s32.f32 %v387
        %v452 = vcvt.s32.f32 %v388
        %v453 = vcvt.s32.f32 %v389
        %v454 = vcvt.s32.f32 %v390
        %v455 = vcvt.s32.f32 %v391
        %v456 = vcvt.s32.f32 %v392
        %v457 = vcvt.s32.f32 %v393
        %v458 = vcvt.s32.f32 %v394
        %v459 = vcvt.s32.f32 %v395
        %v460 = vcvt.s32.f32 %v396
        %v461 = vcvt.s32.f32 %v397
        %v462 = vcvt.s32.f32 %v398
        %v463 = vcvt.s32.f32 %v399
        %v464 = vcvt.s32.f32 %v400
        %v465 = vcvt.s32.f32 %v401
        %v466 = vcvt.s32.f32 %v402
        %v467 = vcvt.s32.f32 %v403
        %v468 = vcvt.s32.f32 %v404
        %v469 = vcvt.s32.f32 %v405
        %v470 = vcvt.s32.f32 %v406
        %v471 = vcvt.s32.f32 %v407
        %v472 = vcvt.s32.f32 %v408
        %v473 = vcvt.s32.f32 %v409
        %v474 = vcvt.s32.f32 %v410
        %v475 = vcvt.s32.f32 %v411
        %v476 = vcvt.s32.f32 %v412
        %vm477 = vcmask 523264
        %v479 = vsel %vm477, %v193, 0
        %v482 = vsel %vm477, %v194, 0
        %v485 = vsel %vm477, %v195, 0
        %v488 = vsel %vm477, %v196, 0
        %v491 = vsel %vm477, %v197, 0
        %v494 = vsel %vm477, %v198, 0
        %v497 = vsel %vm477, %v199, 0
        %v500 = vsel %vm477, %v200, 0
        %v503 = vsel %vm477, %v201, 0
        %v506 = vsel %vm477, %v202, 0
        %v509 = vsel %vm477, %v203, 0
        %v512 = vsel %vm477, %v204, 0
        %v515 = vsel %vm477, %v205, 0
        %v518 = vsel %vm477, %v206, 0
        %v521 = vsel %vm477, %v207, 0
        %v524 = vsel %vm477, %v208, 0
        %526 = vmatprep.subr.mxu0 %v414
        %527 = vmatpush1.msra.mxu0 %v413
        %528 = vmatprep.subr.mxu0 %v422
        %529 = vmatpush1.msra.mxu0 %v421
        %530 = vmatprep.subr.mxu0 %v430
        %531 = vmatpush1.msra.mxu0 %v429
        %532 = vmatprep.subr.mxu0 %v438
        %533 = vmatpush1.msra.mxu0 %v437
        %534 = vmatprep.subr.mxu0 %v446
        %535 = vmatpush1.msra.mxu0 %v445
        %536 = vmatprep.subr.mxu0 %v454
        %537 = vmatpush1.msra.mxu0 %v453
        %538 = vmatprep.subr.mxu0 %v462
        %539 = vmatpush1.msra.mxu0 %v461
        %540 = vmatprep.subr.mxu0 %v470
        %541 = vmatpush1.msra.mxu0 %v469
        %542 = vmatprep.subr.mxu0 0.0
        %543 = vmatpush1.msra.mxu0 0.0
        %544 = vmatprep.subr.mxu0 0.0
        %545 = vmatpush1.msra.mxu0 0.0
        %546 = vmatprep.subr.mxu0 0.0
        %547 = vmatpush1.msra.mxu0 0.0
        %548 = vmatprep.subr.mxu0 0.0
        %549 = vmatpush1.msra.mxu0 0.0
        %550 = vmatprep.subr.mxu0 0.0
        %551 = vmatpush1.msra.mxu0 0.0
        %552 = vmatprep.subr.mxu0 0.0
        %553 = vmatpush1.msra.mxu0 0.0
        %554 = vmatprep.subr.mxu0 0.0
        %555 = vmatpush1.msra.mxu0 0.0
        %556 = vmatprep.subr.mxu0 0.0
        %557 = vmatpush1.msra.mxu0 0.0
        %558 = vmatprep.subr.mxu0 0.0
        %559 = vmatpush1.msra.mxu0 0.0
        %560 = vmatprep.subr.mxu0 0.0
        %561 = vmatpush1.msra.mxu0 0.0
        %562 = vmatprep.subr.mxu0 0.0
        %563 = vmatpush1.msra.mxu0 0.0
        %564 = vmatprep.subr.mxu0 0.0
        %565 = vmatpush1.msra.mxu0 0.0
        %566 = vmatprep.subr.mxu0 0.0
        %567 = vmatpush1.msra.mxu0 0.0
        %568 = vmatprep.subr.mxu0 0.0
        %569 = vmatpush1.msra.mxu0 0.0
        %570 = vmatprep.subr.mxu0 0.0
        %571 = vmatpush1.msra.mxu0 0.0
        %572 = vmatprep.subr.mxu0 0.0
        %573 = vmatpush1.msra.mxu0 0.0
        %574 = vmatprep.subr.mxu0 0.0
        %575 = vmatpush1.msra.mxu0 0.0
        %576 = vmatprep.subr.mxu0 0.0
        %577 = vmatpush1.msra.mxu0 0.0
        %578 = vmatprep.subr.mxu0 0.0
        %579 = vmatpush1.msra.mxu0 0.0
        %580 = vmatprep.subr.mxu0 0.0
        %581 = vmatpush1.msra.mxu0 0.0
        %582 = vmatprep.subr.mxu0 0.0
        %583 = vmatpush1.msra.mxu0 0.0
        %584 = vmatprep.subr.mxu0 0.0
        %585 = vmatpush1.msra.mxu0 0.0
        %586 = vmatprep.subr.mxu0 0.0
        %587 = vmatpush1.msra.mxu0 0.0
        %588 = vmatprep.subr.mxu0 0.0
        %589 = vmatpush1.msra.mxu0 0.0
        %590 = vmatprep.mubr.f32.mxu0 0.0
        %591 = vmatmul.mubr.f32.gmra.mrb[0].mxu0 %v479
        %v592 = vpop.f32.mrb[0].mxu0
        %v593 = vadd.f32 0.0, %v592
        %v594 = vpop.f32.mrb[0].mxu0
        %v595 = vadd.f32 0.0, %v594
        %596 = vmatprep.mubr.f32.mxu0 0.0
        %597 = vmatmul.mubr.f32.gmra.mrb[0].mxu0 %v482
        %v598 = vpop.f32.mrb[0].mxu0
        %v599 = vadd.f32 0.0, %v598
        %v600 = vpop.f32.mrb[0].mxu0
        %v601 = vadd.f32 0.0, %v600
        %602 = vmatprep.mubr.f32.mxu0 0.0
        %603 = vmatmul.mubr.f32.gmra.mrb[0].mxu0 %v485
        %v604 = vpop.f32.mrb[0].mxu0
        %v605 = vadd.f32 0.0, %v604
        %v606 = vpop.f32.mrb[0].mxu0
        %v607 = vadd.f32 0.0, %v606
        %608 = vmatprep.mubr.f32.mxu0 0.0
        %609 = vmatmul.mubr.f32.gmra.mrb[0].mxu0 %v488
        %v610 = vpop.f32.mrb[0].mxu0
        %v611 = vadd.f32 0.0, %v610
        %v612 = vpop.f32.mrb[0].mxu0
        %v613 = vadd.f32 0.0, %v612
        %614 = vmatprep.mubr.f32.mxu0 0.0
        %615 = vmatmul.mubr.f32.gmra.mrb[0].mxu0 %v491
        %v616 = vpop.f32.mrb[0].mxu0
        %v617 = vadd.f32 0.0, %v616
        %v618 = vpop.f32.mrb[0].mxu0
        %v619 = vadd.f32 0.0, %v618
        %620 = vmatprep.mubr.f32.mxu0 0.0
        %621 = vmatmul.mubr.f32.gmra.mrb[0].mxu0 %v494
        %v622 = vpop.f32.mrb[0].mxu0
        %v623 = vadd.f32 0.0, %v622
        %v624 = vpop.f32.mrb[0].mxu0
        %v625 = vadd.f32 0.0, %v624
        %626 = vmatprep.mubr.f32.mxu0 0.0
        %627 = vmatmul.mubr.f32.gmra.mrb[0].mxu0 %v497
        %v628 = vpop.f32.mrb[0].mxu0
        %v629 = vadd.f32 0.0, %v628
        %v630 = vpop.f32.mrb[0].mxu0
        %v631 = vadd.f32 0.0, %v630
        %632 = vmatprep.mubr.f32.mxu0 0.0
        %633 = vmatmul.mubr.f32.gmra.mrb[0].mxu0 %v500
        %v634 = vpop.f32.mrb[0].mxu0
        %v635 = vadd.f32 0.0, %v634
        %v636 = vpop.f32.mrb[0].mxu0
        %v637 = vadd.f32 0.0, %v636
        %638 = vmatprep.mubr.f32.mxu0 0.0
        %639 = vmatmul.mubr.f32.gmra.mrb[0].mxu0 %v503
        %v640 = vpop.f32.mrb[0].mxu0
        %v641 = vadd.f32 0.0, %v640
        %v642 = vpop.f32.mrb[0].mxu0
        %v643 = vadd.f32 0.0, %v642
        %644 = vmatprep.mubr.f32.mxu0 0.0
        %645 = vmatmul.mubr.f32.gmra.mrb[0].mxu0 %v506
        %v646 = vpop.f32.mrb[0].mxu0
        %v647 = vadd.f32 0.0, %v646
        %v648 = vpop.f32.mrb[0].mxu0
        %v649 = vadd.f32 0.0, %v648
        %650 = vmatprep.mubr.f32.mxu0 0.0
        %651 = vmatmul.mubr.f32.gmra.mrb[0].mxu0 %v509
        %v652 = vpop.f32.mrb[0].mxu0
        %v653 = vadd.f32 0.0, %v652
        %v654 = vpop.f32.mrb[0].mxu0
        %v655 = vadd.f32 0.0, %v654
        %656 = vmatprep.mubr.f32.mxu0 0.0
        %657 = vmatmul.mubr.f32.gmra.mrb[0].mxu0 %v512
        %v658 = vpop.f32.mrb[0].mxu0
        %v659 = vadd.f32 0.0, %v658
        %v660 = vpop.f32.mrb[0].mxu0
        %v661 = vadd.f32 0.0, %v660
        %662 = vmatprep.mubr.f32.mxu0 0.0
        %663 = vmatmul.mubr.f32.gmra.mrb[0].mxu0 %v515
        %v664 = vpop.f32.mrb[0].mxu0
        %v665 = vadd.f32 0.0, %v664
        %v666 = vpop.f32.mrb[0].mxu0
        %v667 = vadd.f32 0.0, %v666
        %668 = vmatprep.mubr.f32.mxu0 0.0
        %669 = vmatmul.mubr.f32.gmra.mrb[0].mxu0 %v518
        %v670 = vpop.f32.mrb[0].mxu0
        %v671 = vadd.f32 0.0, %v670
        %v672 = vpop.f32.mrb[0].mxu0
        %v673 = vadd.f32 0.0, %v672
        %674 = vmatprep.mubr.f32.mxu0 0.0
        %675 = vmatmul.mubr.f32.gmra.mrb[0].mxu0 %v521
        %v676 = vpop.f32.mrb[0].mxu0
        %v677 = vadd.f32 0.0, %v676
        %v678 = vpop.f32.mrb[0].mxu0
        %v679 = vadd.f32 0.0, %v678
        %680 = vmatprep.mubr.f32.mxu0 0.0
        %681 = vmatmul.mubr.f32.gmra.mrb[0].mxu0 %v524
        %v682 = vpop.f32.mrb[0].mxu0
        %v683 = vadd.f32 0.0, %v682
        %v684 = vpop.f32.mrb[0].mxu0
        %v685 = vadd.f32 0.0, %v684
        %686 = vdwg.mxu0
        %687 = vmatprep.subr.mxu0 %v416
        %688 = vmatpush1.msra.mxu0 %v415
        %689 = vmatprep.subr.mxu0 %v424
        %690 = vmatpush1.msra.mxu0 %v423
        %691 = vmatprep.subr.mxu0 %v432
        %692 = vmatpush1.msra.mxu0 %v431
        %693 = vmatprep.subr.mxu0 %v440
        %694 = vmatpush1.msra.mxu0 %v439
        %695 = vmatprep.subr.mxu0 %v448
        %696 = vmatpush1.msra.mxu0 %v447
        %697 = vmatprep.subr.mxu0 %v456
        %698 = vmatpush1.msra.mxu0 %v455
        %699 = vmatprep.subr.mxu0 %v464
        %700 = vmatpush1.msra.mxu0 %v463
        %701 = vmatprep.subr.mxu0 %v472
        %702 = vmatpush1.msra.mxu0 %v471
        %703 = vmatprep.subr.mxu0 0.0
        %704 = vmatpush1.msra.mxu0 0.0
        %705 = vmatprep.subr.mxu0 0.0
        %706 = vmatpush1.msra.mxu0 0.0
        %707 = vmatprep.subr.mxu0 0.0
        %708 = vmatpush1.msra.mxu0 0.0
        %709 = vmatprep.subr.mxu0 0.0
        %710 = vmatpush1.msra.mxu0 0.0
        %711 = vmatprep.subr.mxu0 0.0
        %712 = vmatpush1.msra.mxu0 0.0
        %713 = vmatprep.subr.mxu0 0.0
        %714 = vmatpush1.msra.mxu0 0.0
        %715 = vmatprep.subr.mxu0 0.0
        %716 = vmatpush1.msra.mxu0 0.0
        %717 = vmatprep.subr.mxu0 0.0
        %718 = vmatpush1.msra.mxu0 0.0
        %719 = vmatprep.subr.mxu0 0.0
        %720 = vmatpush1.msra.mxu0 0.0
        %721 = vmatprep.subr.mxu0 0.0
        %722 = vmatpush1.msra.mxu0 0.0
        %723 = vmatprep.subr.mxu0 0.0
        %724 = vmatpush1.msra.mxu0 0.0
        %725 = vmatprep.subr.mxu0 0.0
        %726 = vmatpush1.msra.mxu0 0.0
        %727 = vmatprep.subr.mxu0 0.0
        %728 = vmatpush1.msra.mxu0 0.0
        %729 = vmatprep.subr.mxu0 0.0
        %730 = vmatpush1.msra.mxu0 0.0
        %731 = vmatprep.subr.mxu0 0.0
        %732 = vmatpush1.msra.mxu0 0.0
        %733 = vmatprep.subr.mxu0 0.0
        %734 = vmatpush1.msra.mxu0 0.0
        %735 = vmatprep.subr.mxu0 0.0
        %736 = vmatpush1.msra.mxu0 0.0
        %737 = vmatprep.subr.mxu0 0.0
        %738 = vmatpush1.msra.mxu0 0.0
        %739 = vmatprep.subr.mxu0 0.0
        %740 = vmatpush1.msra.mxu0 0.0
        %741 = vmatprep.subr.mxu0 0.0
        %742 = vmatpush1.msra.mxu0 0.0
        %743 = vmatprep.subr.mxu0 0.0
        %744 = vmatpush1.msra.mxu0 0.0
        %745 = vmatprep.subr.mxu0 0.0
        %746 = vmatpush1.msra.mxu0 0.0
        %747 = vmatprep.subr.mxu0 0.0
        %748 = vmatpush1.msra.mxu0 0.0
        %749 = vmatprep.subr.mxu0 0.0
        %750 = vmatpush1.msra.mxu0 0.0
        %751 = vmatprep.mubr.f32.mxu0 0.0
        %752 = vmatmul.mubr.f32.gmra.mrb[0].mxu0 %v479
        %v753 = vpop.f32.mrb[0].mxu0
        %v754 = vadd.f32 0.0, %v753
        %v755 = vpop.f32.mrb[0].mxu0
        %v756 = vadd.f32 0.0, %v755
        %757 = vmatprep.mubr.f32.mxu0 0.0
        %758 = vmatmul.mubr.f32.gmra.mrb[0].mxu0 %v482
        %v759 = vpop.f32.mrb[0].mxu0
        %v760 = vadd.f32 0.0, %v759
        %v761 = vpop.f32.mrb[0].mxu0
        %v762 = vadd.f32 0.0, %v761
        %763 = vmatprep.mubr.f32.mxu0 0.0
        %764 = vmatmul.mubr.f32.gmra.mrb[0].mxu0 %v485
        %v765 = vpop.f32.mrb[0].mxu0
        %v766 = vadd.f32 0.0, %v765
        %v767 = vpop.f32.mrb[0].mxu0
        %v768 = vadd.f32 0.0, %v767
        %769 = vmatprep.mubr.f32.mxu0 0.0
        %770 = vmatmul.mubr.f32.gmra.mrb[0].mxu0 %v488
        %v771 = vpop.f32.mrb[0].mxu0
        %v772 = vadd.f32 0.0, %v771
        %v773 = vpop.f32.mrb[0].mxu0
        %v774 = vadd.f32 0.0, %v773
        %775 = vmatprep.mubr.f32.mxu0 0.0
        %776 = vmatmul.mubr.f32.gmra.mrb[0].mxu0 %v491
        %v777 = vpop.f32.mrb[0].mxu0
        %v778 = vadd.f32 0.0, %v777
        %v779 = vpop.f32.mrb[0].mxu0
        %v780 = vadd.f32 0.0, %v779
        %781 = vmatprep.mubr.f32.mxu0 0.0
        %782 = vmatmul.mubr.f32.gmra.mrb[0].mxu0 %v494
        %v783 = vpop.f32.mrb[0].mxu0
        %v784 = vadd.f32 0.0, %v783
        %v785 = vpop.f32.mrb[0].mxu0
        %v786 = vadd.f32 0.0, %v785
        %787 = vmatprep.mubr.f32.mxu0 0.0
        %788 = vmatmul.mubr.f32.gmra.mrb[0].mxu0 %v497
        %v789 = vpop.f32.mrb[0].mxu0
        %v790 = vadd.f32 0.0, %v789
        %v791 = vpop.f32.mrb[0].mxu0
        %v792 = vadd.f32 0.0, %v791
        %793 = vmatprep.mubr.f32.mxu0 0.0
        %794 = vmatmul.mubr.f32.gmra.mrb[0].mxu0 %v500
        %v795 = vpop.f32.mrb[0].mxu0
        %v796 = vadd.f32 0.0, %v795
        %v797 = vpop.f32.mrb[0].mxu0
        %v798 = vadd.f32 0.0, %v797
        %799 = vmatprep.mubr.f32.mxu0 0.0
        %800 = vmatmul.mubr.f32.gmra.mrb[0].mxu0 %v503
        %v801 = vpop.f32.mrb[0].mxu0
        %v802 = vadd.f32 0.0, %v801
        %v803 = vpop.f32.mrb[0].mxu0
        %v804 = vadd.f32 0.0, %v803
        %805 = vmatprep.mubr.f32.mxu0 0.0
        %806 = vmatmul.mubr.f32.gmra.mrb[0].mxu0 %v506
        %v807 = vpop.f32.mrb[0].mxu0
        %v808 = vadd.f32 0.0, %v807
        %v809 = vpop.f32.mrb[0].mxu0
        %v810 = vadd.f32 0.0, %v809
        %811 = vmatprep.mubr.f32.mxu0 0.0
        %812 = vmatmul.mubr.f32.gmra.mrb[0].mxu0 %v509
        %v813 = vpop.f32.mrb[0].mxu0
        %v814 = vadd.f32 0.0, %v813
        %v815 = vpop.f32.mrb[0].mxu0
        %v816 = vadd.f32 0.0, %v815
        %817 = vmatprep.mubr.f32.mxu0 0.0
        %818 = vmatmul.mubr.f32.gmra.mrb[0].mxu0 %v512
        %v819 = vpop.f32.mrb[0].mxu0
        %v820 = vadd.f32 0.0, %v819
        %v821 = vpop.f32.mrb[0].mxu0
        %v822 = vadd.f32 0.0, %v821
        %823 = vmatprep.mubr.f32.mxu0 0.0
        %824 = vmatmul.mubr.f32.gmra.mrb[0].mxu0 %v515
        %v825 = vpop.f32.mrb[0].mxu0
        %v826 = vadd.f32 0.0, %v825
        %v827 = vpop.f32.mrb[0].mxu0
        %v828 = vadd.f32 0.0, %v827
        %829 = vmatprep.mubr.f32.mxu0 0.0
        %830 = vmatmul.mubr.f32.gmra.mrb[0].mxu0 %v518
        %v831 = vpop.f32.mrb[0].mxu0
        %v832 = vadd.f32 0.0, %v831
        %v833 = vpop.f32.mrb[0].mxu0
        %v834 = vadd.f32 0.0, %v833
        %835 = vmatprep.mubr.f32.mxu0 0.0
        %836 = vmatmul.mubr.f32.gmra.mrb[0].mxu0 %v521
        %v837 = vpop.f32.mrb[0].mxu0
        %v838 = vadd.f32 0.0, %v837
        %v839 = vpop.f32.mrb[0].mxu0
        %v840 = vadd.f32 0.0, %v839
        %841 = vmatprep.mubr.f32.mxu0 0.0
        %842 = vmatmul.mubr.f32.gmra.mrb[0].mxu0 %v524
        %v843 = vpop.f32.mrb[0].mxu0
        %v844 = vadd.f32 0.0, %v843
        %v845 = vpop.f32.mrb[0].mxu0
        %v846 = vadd.f32 0.0, %v845
        %847 = vdwg.mxu0
        %848 = vmatprep.subr.mxu0 %v418
        %849 = vmatpush1.msra.mxu0 %v417
        %850 = vmatprep.subr.mxu0 %v426
        %851 = vmatpush1.msra.mxu0 %v425
        %852 = vmatprep.subr.mxu0 %v434
        %853 = vmatpush1.msra.mxu0 %v433
        %854 = vmatprep.subr.mxu0 %v442
        %855 = vmatpush1.msra.mxu0 %v441
        %856 = vmatprep.subr.mxu0 %v450
        %857 = vmatpush1.msra.mxu0 %v449
        %858 = vmatprep.subr.mxu0 %v458
        %859 = vmatpush1.msra.mxu0 %v457
        %860 = vmatprep.subr.mxu0 %v466
        %861 = vmatpush1.msra.mxu0 %v465
        %862 = vmatprep.subr.mxu0 %v474
        %863 = vmatpush1.msra.mxu0 %v473
        %864 = vmatprep.subr.mxu0 0.0
        %865 = vmatpush1.msra.mxu0 0.0
        %866 = vmatprep.subr.mxu0 0.0
        %867 = vmatpush1.msra.mxu0 0.0
        %868 = vmatprep.subr.mxu0 0.0
        %869 = vmatpush1.msra.mxu0 0.0
        %870 = vmatprep.subr.mxu0 0.0
        %871 = vmatpush1.msra.mxu0 0.0
        %872 = vmatprep.subr.mxu0 0.0
        %873 = vmatpush1.msra.mxu0 0.0
        %874 = vmatprep.subr.mxu0 0.0
        %875 = vmatpush1.msra.mxu0 0.0
        %876 = vmatprep.subr.mxu0 0.0
        %877 = vmatpush1.msra.mxu0 0.0
        %878 = vmatprep.subr.mxu0 0.0
        %879 = vmatpush1.msra.mxu0 0.0
        %880 = vmatprep.subr.mxu0 0.0
        %881 = vmatpush1.msra.mxu0 0.0
        %882 = vmatprep.subr.mxu0 0.0
        %883 = vmatpush1.msra.mxu0 0.0
        %884 = vmatprep.subr.mxu0 0.0
        %885 = vmatpush1.msra.mxu0 0.0
        %886 = vmatprep.subr.mxu0 0.0
        %887 = vmatpush1.msra.mxu0 0.0
        %888 = vmatprep.subr.mxu0 0.0
        %889 = vmatpush1.msra.mxu0 0.0
        %890 = vmatprep.subr.mxu0 0.0
        %891 = vmatpush1.msra.mxu0 0.0
        %892 = vmatprep.subr.mxu0 0.0
        %893 = vmatpush1.msra.mxu0 0.0
        %894 = vmatprep.subr.mxu0 0.0
        %895 = vmatpush1.msra.mxu0 0.0
        %896 = vmatprep.subr.mxu0 0.0
        %897 = vmatpush1.msra.mxu0 0.0
        %898 = vmatprep.subr.mxu0 0.0
        %899 = vmatpush1.msra.mxu0 0.0
        %900 = vmatprep.subr.mxu0 0.0
        %901 = vmatpush1.msra.mxu0 0.0
        %902 = vmatprep.subr.mxu0 0.0
        %903 = vmatpush1.msra.mxu0 0.0
        %904 = vmatprep.subr.mxu0 0.0
        %905 = vmatpush1.msra.mxu0 0.0
        %906 = vmatprep.subr.mxu0 0.0
        %907 = vmatpush1.msra.mxu0 0.0
        %908 = vmatprep.subr.mxu0 0.0
        %909 = vmatpush1.msra.mxu0 0.0
        %910 = vmatprep.subr.mxu0 0.0
        %911 = vmatpush1.msra.mxu0 0.0
        %912 = vmatprep.mubr.f32.mxu0 0.0
        %913 = vmatmul.mubr.f32.gmra.mrb[0].mxu0 %v479
        %v914 = vpop.f32.mrb[0].mxu0
        %v915 = vadd.f32 0.0, %v914
        %v916 = vpop.f32.mrb[0].mxu0
        %v917 = vadd.f32 0.0, %v916
        %918 = vmatprep.mubr.f32.mxu0 0.0
        %919 = vmatmul.mubr.f32.gmra.mrb[0].mxu0 %v482
        %v920 = vpop.f32.mrb[0].mxu0
        %v921 = vadd.f32 0.0, %v920
        %v922 = vpop.f32.mrb[0].mxu0
        %v923 = vadd.f32 0.0, %v922
        %924 = vmatprep.mubr.f32.mxu0 0.0
        %925 = vmatmul.mubr.f32.gmra.mrb[0].mxu0 %v485
        %v926 = vpop.f32.mrb[0].mxu0
        %v927 = vadd.f32 0.0, %v926
        %v928 = vpop.f32.mrb[0].mxu0
        %v929 = vadd.f32 0.0, %v928
        %930 = vmatprep.mubr.f32.mxu0 0.0
        %931 = vmatmul.mubr.f32.gmra.mrb[0].mxu0 %v488
        %v932 = vpop.f32.mrb[0].mxu0
        %v933 = vadd.f32 0.0, %v932
        %v934 = vpop.f32.mrb[0].mxu0
        %v935 = vadd.f32 0.0, %v934
        %936 = vmatprep.mubr.f32.mxu0 0.0
        %937 = vmatmul.mubr.f32.gmra.mrb[0].mxu0 %v491
        %v938 = vpop.f32.mrb[0].mxu0
        %v939 = vadd.f32 0.0, %v938
        %v940 = vpop.f32.mrb[0].mxu0
        %v941 = vadd.f32 0.0, %v940
        %942 = vmatprep.mubr.f32.mxu0 0.0
        %943 = vmatmul.mubr.f32.gmra.mrb[0].mxu0 %v494
        %v944 = vpop.f32.mrb[0].mxu0
        %v945 = vadd.f32 0.0, %v944
        %v946 = vpop.f32.mrb[0].mxu0
        %v947 = vadd.f32 0.0, %v946
        %948 = vmatprep.mubr.f32.mxu0 0.0
        %949 = vmatmul.mubr.f32.gmra.mrb[0].mxu0 %v497
        %v950 = vpop.f32.mrb[0].mxu0
        %v951 = vadd.f32 0.0, %v950
        %v952 = vpop.f32.mrb[0].mxu0
        %v953 = vadd.f32 0.0, %v952
        %954 = vmatprep.mubr.f32.mxu0 0.0
        %955 = vmatmul.mubr.f32.gmra.mrb[0].mxu0 %v500
        %v956 = vpop.f32.mrb[0].mxu0
        %v957 = vadd.f32 0.0, %v956
        %v958 = vpop.f32.mrb[0].mxu0
        %v959 = vadd.f32 0.0, %v958
        %960 = vmatprep.mubr.f32.mxu0 0.0
        %961 = vmatmul.mubr.f32.gmra.mrb[0].mxu0 %v503
        %v962 = vpop.f32.mrb[0].mxu0
        %v963 = vadd.f32 0.0, %v962
        %v964 = vpop.f32.mrb[0].mxu0
        %v965 = vadd.f32 0.0, %v964
        %966 = vmatprep.mubr.f32.mxu0 0.0
        %967 = vmatmul.mubr.f32.gmra.mrb[0].mxu0 %v506
        %v968 = vpop.f32.mrb[0].mxu0
        %v969 = vadd.f32 0.0, %v968
        %v970 = vpop.f32.mrb[0].mxu0
        %v971 = vadd.f32 0.0, %v970
        %972 = vmatprep.mubr.f32.mxu0 0.0
        %973 = vmatmul.mubr.f32.gmra.mrb[0].mxu0 %v509
        %v974 = vpop.f32.mrb[0].mxu0
        %v975 = vadd.f32 0.0, %v974
        %v976 = vpop.f32.mrb[0].mxu0
        %v977 = vadd.f32 0.0, %v976
        %978 = vmatprep.mubr.f32.mxu0 0.0
        %979 = vmatmul.mubr.f32.gmra.mrb[0].mxu0 %v512
        %v980 = vpop.f32.mrb[0].mxu0
        %v981 = vadd.f32 0.0, %v980
        %v982 = vpop.f32.mrb[0].mxu0
        %v983 = vadd.f32 0.0, %v982
        %984 = vmatprep.mubr.f32.mxu0 0.0
        %985 = vmatmul.mubr.f32.gmra.mrb[0].mxu0 %v515
        %v986 = vpop.f32.mrb[0].mxu0
        %v987 = vadd.f32 0.0, %v986
        %v988 = vpop.f32.mrb[0].mxu0
        %v989 = vadd.f32 0.0, %v988
        %990 = vmatprep.mubr.f32.mxu0 0.0
        %991 = vmatmul.mubr.f32.gmra.mrb[0].mxu0 %v518
        %v992 = vpop.f32.mrb[0].mxu0
        %v993 = vadd.f32 0.0, %v992
        %v994 = vpop.f32.mrb[0].mxu0
        %v995 = vadd.f32 0.0, %v994
        %996 = vmatprep.mubr.f32.mxu0 0.0
        %997 = vmatmul.mubr.f32.gmra.mrb[0].mxu0 %v521
        %v998 = vpop.f32.mrb[0].mxu0
        %v999 = vadd.f32 0.0, %v998
        %v1000 = vpop.f32.mrb[0].mxu0
        %v1001 = vadd.f32 0.0, %v1000
        %1002 = vmatprep.mubr.f32.mxu0 0.0
        %1003 = vmatmul.mubr.f32.gmra.mrb[0].mxu0 %v524
        %v1004 = vpop.f32.mrb[0].mxu0
        %v1005 = vadd.f32 0.0, %v1004
        %v1006 = vpop.f32.mrb[0].mxu0
        %v1007 = vadd.f32 0.0, %v1006
        %1008 = vdwg.mxu0
        %1009 = vmatprep.subr.mxu0 %v420
        %1010 = vmatpush1.msra.mxu0 %v419
        %1011 = vmatprep.subr.mxu0 %v428
        %1012 = vmatpush1.msra.mxu0 %v427
        %1013 = vmatprep.subr.mxu0 %v436
        %1014 = vmatpush1.msra.mxu0 %v435
        %1015 = vmatprep.subr.mxu0 %v444
        %1016 = vmatpush1.msra.mxu0 %v443
        %1017 = vmatprep.subr.mxu0 %v452
        %1018 = vmatpush1.msra.mxu0 %v451
        %1019 = vmatprep.subr.mxu0 %v460
        %1020 = vmatpush1.msra.mxu0 %v459
        %1021 = vmatprep.subr.mxu0 %v468
        %1022 = vmatpush1.msra.mxu0 %v467
        %1023 = vmatprep.subr.mxu0 %v476
        %1024 = vmatpush1.msra.mxu0 %v475
        %1025 = vmatprep.subr.mxu0 0.0
        %1026 = vmatpush1.msra.mxu0 0.0
        %1027 = vmatprep.subr.mxu0 0.0
        %1028 = vmatpush1.msra.mxu0 0.0
        %1029 = vmatprep.subr.mxu0 0.0
        %1030 = vmatpush1.msra.mxu0 0.0
        %1031 = vmatprep.subr.mxu0 0.0
        %1032 = vmatpush1.msra.mxu0 0.0
        %1033 = vmatprep.subr.mxu0 0.0
        %1034 = vmatpush1.msra.mxu0 0.0
        %1035 = vmatprep.subr.mxu0 0.0
        %1036 = vmatpush1.msra.mxu0 0.0
        %1037 = vmatprep.subr.mxu0 0.0
        %1038 = vmatpush1.msra.mxu0 0.0
        %1039 = vmatprep.subr.mxu0 0.0
        %1040 = vmatpush1.msra.mxu0 0.0
        %1041 = vmatprep.subr.mxu0 0.0
        %1042 = vmatpush1.msra.mxu0 0.0
        %1043 = vmatprep.subr.mxu0 0.0
        %1044 = vmatpush1.msra.mxu0 0.0
        %1045 = vmatprep.subr.mxu0 0.0
        %1046 = vmatpush1.msra.mxu0 0.0
        %1047 = vmatprep.subr.mxu0 0.0
        %1048 = vmatpush1.msra.mxu0 0.0
        %1049 = vmatprep.subr.mxu0 0.0
        %1050 = vmatpush1.msra.mxu0 0.0
        %1051 = vmatprep.subr.mxu0 0.0
        %1052 = vmatpush1.msra.mxu0 0.0
        %1053 = vmatprep.subr.mxu0 0.0
        %1054 = vmatpush1.msra.mxu0 0.0
        %1055 = vmatprep.subr.mxu0 0.0
        %1056 = vmatpush1.msra.mxu0 0.0
        %1057 = vmatprep.subr.mxu0 0.0
        %1058 = vmatpush1.msra.mxu0 0.0
        %1059 = vmatprep.subr.mxu0 0.0
        %1060 = vmatpush1.msra.mxu0 0.0
        %1061 = vmatprep.subr.mxu0 0.0
        %1062 = vmatpush1.msra.mxu0 0.0
        %1063 = vmatprep.subr.mxu0 0.0
        %1064 = vmatpush1.msra.mxu0 0.0
        %1065 = vmatprep.subr.mxu0 0.0
        %1066 = vmatpush1.msra.mxu0 0.0
        %1067 = vmatprep.subr.mxu0 0.0
        %1068 = vmatpush1.msra.mxu0 0.0
        %1069 = vmatprep.subr.mxu0 0.0
        %1070 = vmatpush1.msra.mxu0 0.0
        %1071 = vmatprep.subr.mxu0 0.0
        %1072 = vmatpush1.msra.mxu0 0.0
        %1073 = vmatprep.mubr.f32.mxu0 0.0
        %1074 = vmatmul.mubr.f32.gmra.mrb[0].mxu0 %v479
        %v1075 = vpop.f32.mrb[0].mxu0
        %v1076 = vadd.f32 0.0, %v1075
        %v1077 = vpop.f32.mrb[0].mxu0
        %v1078 = vadd.f32 0.0, %v1077
        %1079 = vmatprep.mubr.f32.mxu0 0.0
        %1080 = vmatmul.mubr.f32.gmra.mrb[0].mxu0 %v482
        %v1081 = vpop.f32.mrb[0].mxu0
        %v1082 = vadd.f32 0.0, %v1081
        %v1083 = vpop.f32.mrb[0].mxu0
        %v1084 = vadd.f32 0.0, %v1083
        %1085 = vmatprep.mubr.f32.mxu0 0.0
        %1086 = vmatmul.mubr.f32.gmra.mrb[0].mxu0 %v485
        %v1087 = vpop.f32.mrb[0].mxu0
        %v1088 = vadd.f32 0.0, %v1087
        %v1089 = vpop.f32.mrb[0].mxu0
        %v1090 = vadd.f32 0.0, %v1089
        %1091 = vmatprep.mubr.f32.mxu0 0.0
        %1092 = vmatmul.mubr.f32.gmra.mrb[0].mxu0 %v488
        %v1093 = vpop.f32.mrb[0].mxu0
        %v1094 = vadd.f32 0.0, %v1093
        %v1095 = vpop.f32.mrb[0].mxu0
        %v1096 = vadd.f32 0.0, %v1095
        %1097 = vmatprep.mubr.f32.mxu0 0.0
        %1098 = vmatmul.mubr.f32.gmra.mrb[0].mxu0 %v491
        %v1099 = vpop.f32.mrb[0].mxu0
        %v1100 = vadd.f32 0.0, %v1099
        %v1101 = vpop.f32.mrb[0].mxu0
        %v1102 = vadd.f32 0.0, %v1101
        %1103 = vmatprep.mubr.f32.mxu0 0.0
        %1104 = vmatmul.mubr.f32.gmra.mrb[0].mxu0 %v494
        %v1105 = vpop.f32.mrb[0].mxu0
        %v1106 = vadd.f32 0.0, %v1105
        %v1107 = vpop.f32.mrb[0].mxu0
        %v1108 = vadd.f32 0.0, %v1107
        %1109 = vmatprep.mubr.f32.mxu0 0.0
        %1110 = vmatmul.mubr.f32.gmra.mrb[0].mxu0 %v497
        %v1111 = vpop.f32.mrb[0].mxu0
        %v1112 = vadd.f32 0.0, %v1111
        %v1113 = vpop.f32.mrb[0].mxu0
        %v1114 = vadd.f32 0.0, %v1113
        %1115 = vmatprep.mubr.f32.mxu0 0.0
        %1116 = vmatmul.mubr.f32.gmra.mrb[0].mxu0 %v500
        %v1117 = vpop.f32.mrb[0].mxu0
        %v1118 = vadd.f32 0.0, %v1117
        %v1119 = vpop.f32.mrb[0].mxu0
        %v1120 = vadd.f32 0.0, %v1119
        %1121 = vmatprep.mubr.f32.mxu0 0.0
        %1122 = vmatmul.mubr.f32.gmra.mrb[0].mxu0 %v503
        %v1123 = vpop.f32.mrb[0].mxu0
        %v1124 = vadd.f32 0.0, %v1123
        %v1125 = vpop.f32.mrb[0].mxu0
        %v1126 = vadd.f32 0.0, %v1125
        %1127 = vmatprep.mubr.f32.mxu0 0.0
        %1128 = vmatmul.mubr.f32.gmra.mrb[0].mxu0 %v506
        %v1129 = vpop.f32.mrb[0].mxu0
        %v1130 = vadd.f32 0.0, %v1129
        %v1131 = vpop.f32.mrb[0].mxu0
        %v1132 = vadd.f32 0.0, %v1131
        %1133 = vmatprep.mubr.f32.mxu0 0.0
        %1134 = vmatmul.mubr.f32.gmra.mrb[0].mxu0 %v509
        %v1135 = vpop.f32.mrb[0].mxu0
        %v1136 = vadd.f32 0.0, %v1135
        %v1137 = vpop.f32.mrb[0].mxu0
        %v1138 = vadd.f32 0.0, %v1137
        %1139 = vmatprep.mubr.f32.mxu0 0.0
        %1140 = vmatmul.mubr.f32.gmra.mrb[0].mxu0 %v512
        %v1141 = vpop.f32.mrb[0].mxu0
        %v1142 = vadd.f32 0.0, %v1141
        %v1143 = vpop.f32.mrb[0].mxu0
        %v1144 = vadd.f32 0.0, %v1143
        %1145 = vmatprep.mubr.f32.mxu0 0.0
        %1146 = vmatmul.mubr.f32.gmra.mrb[0].mxu0 %v515
        %v1147 = vpop.f32.mrb[0].mxu0
        %v1148 = vadd.f32 0.0, %v1147
        %v1149 = vpop.f32.mrb[0].mxu0
        %v1150 = vadd.f32 0.0, %v1149
        %1151 = vmatprep.mubr.f32.mxu0 0.0
        %1152 = vmatmul.mubr.f32.gmra.mrb[0].mxu0 %v518
        %v1153 = vpop.f32.mrb[0].mxu0
        %v1154 = vadd.f32 0.0, %v1153
        %v1155 = vpop.f32.mrb[0].mxu0
        %v1156 = vadd.f32 0.0, %v1155
        %1157 = vmatprep.mubr.f32.mxu0 0.0
        %1158 = vmatmul.mubr.f32.gmra.mrb[0].mxu0 %v521
        %v1159 = vpop.f32.mrb[0].mxu0
        %v1160 = vadd.f32 0.0, %v1159
        %v1161 = vpop.f32.mrb[0].mxu0
        %v1162 = vadd.f32 0.0, %v1161
        %1163 = vmatprep.mubr.f32.mxu0 0.0
        %1164 = vmatmul.mubr.f32.gmra.mrb[0].mxu0 %v524
        %v1165 = vpop.f32.mrb[0].mxu0
        %v1166 = vadd.f32 0.0, %v1165
        %v1167 = vpop.f32.mrb[0].mxu0
        %v1168 = vadd.f32 0.0, %v1167
        %1169 = vdwg.mxu0
        %v1170 = vmul.f32 %v593, %v915
        %v1171 = vmul.f32 %v595, %v917
        %v1172 = vmul.f32 %v754, %v1076
        %v1173 = vmul.f32 %v756, %v1078
        %v1174 = vmul.f32 %v599, %v921
        %v1175 = vmul.f32 %v601, %v923
        %v1176 = vmul.f32 %v760, %v1082
        %v1177 = vmul.f32 %v762, %v1084
        %v1178 = vmul.f32 %v605, %v927
        %v1179 = vmul.f32 %v607, %v929
        %v1180 = vmul.f32 %v766, %v1088
        %v1181 = vmul.f32 %v768, %v1090
        %v1182 = vmul.f32 %v611, %v933
        %v1183 = vmul.f32 %v613, %v935
        %v1184 = vmul.f32 %v772, %v1094
        %v1185 = vmul.f32 %v774, %v1096
        %v1186 = vmul.f32 %v617, %v939
        %v1187 = vmul.f32 %v619, %v941
        %v1188 = vmul.f32 %v778, %v1100
        %v1189 = vmul.f32 %v780, %v1102
        %v1190 = vmul.f32 %v623, %v945
        %v1191 = vmul.f32 %v625, %v947
        %v1192 = vmul.f32 %v784, %v1106
        %v1193 = vmul.f32 %v786, %v1108
        %v1194 = vmul.f32 %v629, %v951
        %v1195 = vmul.f32 %v631, %v953
        %v1196 = vmul.f32 %v790, %v1112
        %v1197 = vmul.f32 %v792, %v1114
        %v1198 = vmul.f32 %v635, %v957
        %v1199 = vmul.f32 %v637, %v959
        %v1200 = vmul.f32 %v796, %v1118
        %v1201 = vmul.f32 %v798, %v1120
        %v1202 = vmul.f32 %v641, %v963
        %v1203 = vmul.f32 %v643, %v965
        %v1204 = vmul.f32 %v802, %v1124
        %v1205 = vmul.f32 %v804, %v1126
        %v1206 = vmul.f32 %v647, %v969
        %v1207 = vmul.f32 %v649, %v971
        %v1208 = vmul.f32 %v808, %v1130
        %v1209 = vmul.f32 %v810, %v1132
        %v1210 = vmul.f32 %v653, %v975
        %v1211 = vmul.f32 %v655, %v977
        %v1212 = vmul.f32 %v814, %v1136
        %v1213 = vmul.f32 %v816, %v1138
        %v1214 = vmul.f32 %v659, %v981
        %v1215 = vmul.f32 %v661, %v983
        %v1216 = vmul.f32 %v820, %v1142
        %v1217 = vmul.f32 %v822, %v1144
        %v1218 = vmul.f32 %v665, %v987
        %v1219 = vmul.f32 %v667, %v989
        %v1220 = vmul.f32 %v826, %v1148
        %v1221 = vmul.f32 %v828, %v1150
        %v1222 = vmul.f32 %v671, %v993
        %v1223 = vmul.f32 %v673, %v995
        %v1224 = vmul.f32 %v832, %v1154
        %v1225 = vmul.f32 %v834, %v1156
        %v1226 = vmul.f32 %v677, %v999
        %v1227 = vmul.f32 %v679, %v1001
        %v1228 = vmul.f32 %v838, %v1160
        %v1229 = vmul.f32 %v840, %v1162
        %v1230 = vmul.f32 %v683, %v1005
        %v1231 = vmul.f32 %v685, %v1007
        %v1232 = vmul.f32 %v844, %v1166
        %v1233 = vmul.f32 %v846, %v1168
        %v1234 = vadd.f32 %v1170, %v1174
        %v1235 = vadd.f32 %v1234, %v1178
        %v1236 = vadd.f32 %v1235, %v1182
        %v1237 = vadd.f32 %v1236, %v1186
        %v1238 = vadd.f32 %v1237, %v1190
        %v1239 = vadd.f32 %v1238, %v1194
        %v1240 = vadd.f32 %v1239, %v1198
        %v1241 = vadd.f32 %v1240, %v1202
        %v1242 = vadd.f32 %v1241, %v1206
        %v1243 = vadd.f32 %v1242, %v1210
        %v1244 = vadd.f32 %v1243, %v1214
        %v1245 = vadd.f32 %v1244, %v1218
        %v1246 = vadd.f32 %v1245, %v1222
        %v1247 = vadd.f32 %v1246, %v1226
        %v1248 = vadd.f32 %v1247, %v1230
        %v1249 = vrot.slane %v1248, 4
        %v1250 = vadd.f32 %v1248, %v1249
        %v1251 = vrot.slane %v1250, 2
        %v1252 = vadd.f32 %v1250, %v1251
        %v1253 = vrot.slane %v1252, 1
        %v1254 = vadd.f32 %v1252, %v1253
        %v1255 = vadd.f32 %v1171, %v1175
        %v1256 = vadd.f32 %v1255, %v1179
        %v1257 = vadd.f32 %v1256, %v1183
        %v1258 = vadd.f32 %v1257, %v1187
        %v1259 = vadd.f32 %v1258, %v1191
        %v1260 = vadd.f32 %v1259, %v1195
        %v1261 = vadd.f32 %v1260, %v1199
        %v1262 = vadd.f32 %v1261, %v1203
        %v1263 = vadd.f32 %v1262, %v1207
        %v1264 = vadd.f32 %v1263, %v1211
        %v1265 = vadd.f32 %v1264, %v1215
        %v1266 = vadd.f32 %v1265, %v1219
        %v1267 = vadd.f32 %v1266, %v1223
        %v1268 = vadd.f32 %v1267, %v1227
        %v1269 = vadd.f32 %v1268, %v1231
        %v1270 = vrot.slane %v1269, 4
        %v1271 = vadd.f32 %v1269, %v1270
        %v1272 = vrot.slane %v1271, 2
        %v1273 = vadd.f32 %v1271, %v1272
        %v1274 = vrot.slane %v1273, 1
        %v1275 = vadd.f32 %v1273, %v1274
        %v1276 = vadd.f32 %v1172, %v1176
        %v1277 = vadd.f32 %v1276, %v1180
        %v1278 = vadd.f32 %v1277, %v1184
        %v1279 = vadd.f32 %v1278, %v1188
        %v1280 = vadd.f32 %v1279, %v1192
        %v1281 = vadd.f32 %v1280, %v1196
        %v1282 = vadd.f32 %v1281, %v1200
        %v1283 = vadd.f32 %v1282, %v1204
        %v1284 = vadd.f32 %v1283, %v1208
        %v1285 = vadd.f32 %v1284, %v1212
        %v1286 = vadd.f32 %v1285, %v1216
        %v1287 = vadd.f32 %v1286, %v1220
        %v1288 = vadd.f32 %v1287, %v1224
        %v1289 = vadd.f32 %v1288, %v1228
        %v1290 = vadd.f32 %v1289, %v1232
        %v1291 = vrot.slane %v1290, 4
        %v1292 = vadd.f32 %v1290, %v1291
        %v1293 = vrot.slane %v1292, 2
        %v1294 = vadd.f32 %v1292, %v1293
        %v1295 = vrot.slane %v1294, 1
        %v1296 = vadd.f32 %v1294, %v1295
        %v1297 = vadd.f32 %v1173, %v1177
        %v1298 = vadd.f32 %v1297, %v1181
        %v1299 = vadd.f32 %v1298, %v1185
        %v1300 = vadd.f32 %v1299, %v1189
        %v1301 = vadd.f32 %v1300, %v1193
        %v1302 = vadd.f32 %v1301, %v1197
        %v1303 = vadd.f32 %v1302, %v1201
        %v1304 = vadd.f32 %v1303, %v1205
        %v1305 = vadd.f32 %v1304, %v1209
        %v1306 = vadd.f32 %v1305, %v1213
        %v1307 = vadd.f32 %v1306, %v1217
        %v1308 = vadd.f32 %v1307, %v1221
        %v1309 = vadd.f32 %v1308, %v1225
        %v1310 = vadd.f32 %v1309, %v1229
        %v1311 = vadd.f32 %v1310, %v1233
        %v1312 = vrot.slane %v1311, 4
        %v1313 = vadd.f32 %v1311, %v1312
        %v1314 = vrot.slane %v1313, 2
        %v1315 = vadd.f32 %v1313, %v1314
        %v1316 = vrot.slane %v1315, 1
        %v1317 = vadd.f32 %v1315, %v1316
        %v1322 = vcombine.low %v1254, %v1275
        %v1323 = vcombine.low %v1296, %v1317
        %v1325 = vunpack.c.l.s4 1966171168
        %v1326 = vunpack.c.0.s8 %v1325
        %v1327 = vlaneseq
        %v1328 = vshrl.u32 %v1327, 7
        %v1329 = vsub.s32 %v1326, %v1328
        %v1330 = vrot.slane %v1322, %v1329
        %v1332 = vunpack.c.l.s4 1966171168
        %v1333 = vunpack.c.0.s8 %v1332
        %v1334 = vlaneseq
        %v1335 = vshrl.u32 %v1334, 7
        %v1336 = vsub.s32 %v1333, %v1335
        %v1337 = vrot.slane %v1323, %v1336
        %v1338 = vcombine.low %v1330, %v1337
        %v1340 = vunpack.c.l.s4 1966171168
        %v1341 = vunpack.c.0.s8 %v1340
        %v1342 = vlaneseq
        %v1343 = vshrl.u32 %v1342, 7
        %v1344 = vsub.s32 %v1341, %v1343
        %v1345 = vrot.slane %v1338, %v1344
        %v1347 = vlaneseq
        %vm1348 = vcmp.ge.s32.totalorder %v1347, 0
        %vm1349 = vcmp.lt.s32.totalorder %v1347, 512
        %vm1350 = vmand %vm1348, %vm1349
        %1351 = vst.msk [vmem:[%s176] sm:$0xf] %vm1350, %v1345
        %s1352 = sand.u32 %s92, 1
        %s1353 = scalar_lea.sflag [#allocation3], %s1352
        %s1354 = sand.u32 %s92, 1
        %s1355 = smul.addr %s1354, 4
        %s1356 = scalar_lea.vmem [#allocation2], %s1355
        // Predicated region
        $region29: #{tpu_custom_call.1} parent=27 // pred_check
          %p1357 = pneg %p102
        $region30: #{tpu_custom_call.1} parent=27 // pred_check_branch
          %1359 = sbr.rel (%p1357) target = $region32
        $region31: #{tpu_custom_call.1} parent=27 // pred_region
          %s1360 = smul.u32 4, %s21
          %s1362 = ssub.s32 64, 64
          %1363 = vsyncadd %s1353, %s1362
          %s1364 = smul.addr %s20, 8
          %s1365 = sadd.s32 %s1360, %s1364
          %s1366 = smul.addr %s1365, 16
          %s1367 = scalar_lea.hbm %s2, %s1366
          %s1369 = sshll.u32 %s1356, 4
          %s1370 = int_to_ptr.vmem [resolvable:$true] %s1369
          %1372 = dma.vmem_to_hbm [thread:$0]  %s1370, 64, %s1367, %s1353
        $region32: #{tpu_custom_call.1} parent=27 // pred_fallthru
          _
      $region28: #{tpu_custom_call.1} parent=5 // pred_fallthru
        _
      %p1373 = scmp.le.s32.totalorder 2, %s11
      // Predicated region
      $region33: #{tpu_custom_call.1} parent=5 // pred_check
        %p1374 = pneg %p1373
      $region34: #{tpu_custom_call.1} parent=5 // pred_check_branch
        %1376 = sbr.rel (%p1374) target = $region36
      $region35: #{tpu_custom_call.1} parent=5 // pred_region
        %s1377 = ssub.s32 %s11, 2
        // Predicated region
        $region37: #{tpu_custom_call.1} parent=35 // pred_check
          %p1378 = pneg %p108
        $region38: #{tpu_custom_call.1} parent=35 // pred_check_branch
          %1380 = sbr.rel (%p1378) target = $region40
        $region39: #{tpu_custom_call.1} parent=35 // pred_region
          %s1381 = sand.u32 %s93, 1
          %s1382 = scalar_lea.sflag [#allocation3], %s1381
          %s1383 = sand.u32 %s93, 1
          %s1384 = smul.addr %s1383, 4
          %s1385 = scalar_lea.vmem [#allocation2], %s1384
          %1386 = dma.done %s1382, 64
        $region40: #{tpu_custom_call.1} parent=35 // pred_fallthru
          _
      $region36: #{tpu_custom_call.1} parent=5 // pred_fallthru
        _
    $region6: #{tpu_custom_call.1} parent=1 // loop_footer
      %s15 = sadd.s32 1, %s11
    $region7: #{tpu_custom_call.1} parent=1 // loop_footer_branch
      %10 = sbr.rel target = $region3
    $region8: #{tpu_custom_call.1} parent=1 // loop_exit
      _
    %1387 = vsyncpa [#allocation3], 1
    %s1388 = scalar_lea.sflag [#allocation3], 1
    %1389 = vsyncpa %s1388, 1

</llo_original>
